<compile_context>
chip_gen: v7x
topology: tpu7x:2x2x1
jax: 0.10.0
libtpu: 0.0.40
codegen_flags: <defaults>
</compile_context>

<pallas_src>
import functools

import jax
import jax.numpy as jnp
from jax import lax
from jax.experimental import pallas as pl
from jax.experimental.pallas import tpu as pltpu

_MIB = 1024 * 1024


def _round_up(x, m):
    return ((x + m - 1) // m) * m


def _sublane(dtype) -> int:
    """Native sublane multiple for a dtype: f32 -> 8, bf16 -> 16, int8/fp8 -> 32."""
    bits = jnp.dtype(dtype).itemsize * 8
    return max(8, 256 // bits)


@functools.lru_cache(maxsize=1)
def _vmem_capacity_bytes() -> int:
    try:
        return int(pltpu.get_tpu_info().vmem_capacity_bytes)
    except Exception:
        return 64 * _MIB  # conservative fallback: v7x has the smallest VMEM


# ----------------------------- kernels --------------------------------------


def _linear_kernel_f32_out(x_ref, w_ref, b_ref, o_ref):
    """f32 output: accumulate directly in the K-resident output block (no scratch)."""
    k = pl.program_id(2)
    partial = jnp.dot(x_ref[...], w_ref[...], preferred_element_type=jnp.float32)

    @pl.when(k == 0)
    def _():
        # First K step: straight write (no zero-fill / read-modify-write),
        # bias added exactly once per output tile.
        o_ref[...] = partial + b_ref[...]

    @pl.when(k != 0)
    def _():
        o_ref[...] += partial


def _linear_kernel_lowp_out(x_ref, w_ref, b_ref, o_ref, acc_ref):
    """Non-f32 output: f32 VMEM accumulator, single downcast in the finalize step."""
    k = pl.program_id(2)
    partial = jnp.dot(x_ref[...], w_ref[...], preferred_element_type=jnp.float32)

    @pl.when(k == 0)
    def _():
        acc_ref[...] = partial

    @pl.when(k != 0)
    def _():
        acc_ref[...] += partial

    @pl.when(k == pl.num_programs(2) - 1)
    def _():
        o_ref[...] = (acc_ref[...] + b_ref[...]).astype(o_ref.dtype)


# ----------------------------- module ---------------------------------------


class ExamplePluginModulePallas:
    """Pallas port of ExamplePluginModule (a single nn.Linear).

    The PyTorch (output_dim, input_dim) weight is transposed to (IN, OUT),
    cast to the compute dtype and zero-padded to tile multiples once here,
    so per-call work is only the activation pad (if unaligned) and the kernel.
    """

    def __init__(self, weight, bias, *, tm=512, tn=512, tk=1024, compute_dtype=None):
        OUT, IN = weight.shape
        assert bias.shape == (OUT,)
        self.input_dim, self.output_dim = IN, OUT
        self.compute_dtype = jnp.dtype(compute_dtype or jnp.asarray(weight).dtype)

        in_bytes = self.compute_dtype.itemsize
        # tm is the second-minor dim of both the x block (compute dtype) and the
        # output block (f32 in the common case) -> use the stricter alignment.
        sub = max(_sublane(self.compute_dtype), _sublane(jnp.float32))
        self._sub = sub

        # --- tile selection under a generation-aware VMEM budget ------------
        tn = min(tn, _round_up(OUT, 128))
        tk = min(tk, _round_up(IN, 128))
        tm_max = _round_up(tm, sub)
        budget = int(_vmem_capacity_bytes() * 0.45)

        def est(tm_, tn_, tk_):
            return (2 * tm_ * tk_ * in_bytes      # x tile, double-buffered
                    + 2 * tk_ * tn_ * in_bytes    # W^T tile, double-buffered
                    + 2 * tm_ * tn_ * 4           # output tile, double-buffered
                    + tm_ * tn_ * 4               # f32 accumulator (worst case)
                    + 2 * tn_ * 4)                # bias tile

        # Shrink K first (cheapest), then N, then M, until we fit the budget.
        while est(tm_max, tn, tk) > budget and tk > 128:
            tk = max(128, _round_up(tk // 2, 128))
        while est(tm_max, tn, tk) > budget and tn > 128:
            tn = max(128, _round_up(tn // 2, 128))
        while est(tm_max, tn, tk) > budget and tm_max > sub:
            tm_max = max(sub, _round_up(tm_max // 2, sub))

        self._tm_max, self._tn, self._tk = tm_max, tn, tk
        self._est = est

        INp = _round_up(IN, tk)
        OUTp = _round_up(OUT, tn)
        self._INp, self._OUTp = INp, OUTp

        # One-time weight transpose (OUT, IN) -> (IN, OUT), cast + zero-pad.
        w_t = jnp.asarray(weight).T.astype(self.compute_dtype)
        if (INp, OUTp) != (IN, OUT):
            w_t = jnp.pad(w_t, ((0, INp - IN), (0, OUTp - OUT)))
        self._w_t = w_t

        b = jnp.asarray(bias).astype(jnp.float32)
        if OUTp != OUT:
            b = jnp.pad(b, (0, OUTp - OUT))
        self._b = b.reshape(1, OUTp)

    def __call__(self, x):
        B, IN = x.shape
        assert IN == self.input_dim
        out_dtype = x.dtype
        tn, tk = self._tn, self._tk
        INp, OUTp = self._INp, self._OUTp

        tm = min(self._tm_max, _round_up(B, self._sub))
        Bp = _round_up(B, tm)

        xp = x.astype(self.compute_dtype)
        if (Bp, INp) != (B, IN):
            # TODO(synk): for very large unaligned activations, handle the ragged
            # K/M remainder in-kernel (masked tail) instead of a wrapper-side pad.
            xp = jnp.pad(xp, ((0, Bp - B), (0, INp - IN)))

        grid = (Bp // tm, OUTp // tn, INp // tk)

        use_f32_out = jnp.dtype(out_dtype) == jnp.dtype(jnp.float32)
        kernel = _linear_kernel_f32_out if use_f32_out else _linear_kernel_lowp_out
        scratch = [] if use_f32_out else [pltpu.VMEM((tm, tn), jnp.float32)]

        est = self._est(tm, tn, tk)
        vmem_limit = max(32 * _MIB, 2 * est)
        vmem_limit = min(vmem_limit, int(_vmem_capacity_bytes() * 0.9))

        out = pl.pallas_call(
            kernel,
            out_shape=jax.ShapeDtypeStruct((Bp, OUTp), out_dtype),
            grid=grid,
            in_specs=[
                pl.BlockSpec((tm, tk), lambda i, j, k: (i, k)),   # x tile
                pl.BlockSpec((tk, tn), lambda i, j, k: (k, j)),   # W^T tile (IN, OUT)
                pl.BlockSpec((1, tn), lambda i, j, k: (0, j)),    # bias tile
            ],
            out_specs=pl.BlockSpec((tm, tn), lambda i, j, k: (i, j)),
            scratch_shapes=scratch,
            compiler_params=pltpu.CompilerParams(
                dimension_semantics=("parallel", "parallel", "arbitrary"),
                vmem_limit_bytes=vmem_limit,
            ),
        )(xp, self._w_t, self._b)

        if (Bp, OUTp) != (B, self.output_dim):
            out = out[:B, :self.output_dim]
        return out


if __name__ == "__main__":
    key = jax.random.PRNGKey(0)

    # --- Small demo shape consistent with ExamplePluginModule --------------
    batch, input_dim, output_dim = 8, 32, 16
    kx, kw, kb = jax.random.split(key, 3)
    bound = 1.0 / (input_dim ** 0.5)          # nn.Linear default init range
    weight = jax.random.uniform(kw, (output_dim, input_dim), jnp.float32, -bound, bound)
    bias = jax.random.uniform(kb, (output_dim,), jnp.float32, -bound, bound)
    x = jax.random.normal(kx, (batch, input_dim), jnp.float32)

    mod = ExamplePluginModulePallas(weight, bias)
    y = jax.block_until_ready(mod(x))
    y_ref = x @ weight.T + bias
    assert y.shape == (batch, output_dim)
    assert jnp.allclose(y, y_ref, atol=1e-4, rtol=1e-4), "mismatch vs reference (small)"

    # --- Larger aligned shape exercising the tiled (i, j, k) path ----------
    B2, IN2, OUT2 = 1024, 2048, 1024
    k2x, k2w, k2b = jax.random.split(jax.random.PRNGKey(1), 3)
    bound2 = 1.0 / (IN2 ** 0.5)
    w2 = jax.random.uniform(k2w, (OUT2, IN2), jnp.float32, -bound2, bound2)
    b2 = jax.random.uniform(k2b, (OUT2,), jnp.float32, -bound2, bound2)
    x2 = jax.random.normal(k2x, (B2, IN2), jnp.float32)

    mod2 = ExamplePluginModulePallas(w2, b2)
    y2 = jax.block_until_ready(mod2(x2))
    y2_ref = jnp.dot(x2, w2.T, precision=lax.Precision.HIGHEST) + b2
    assert y2.shape == (B2, OUT2)
    assert jnp.allclose(y2, y2_ref, atol=1e-3, rtol=1e-3), "mismatch vs reference (tiled)"

    # --- bf16 compute path (f32 accumulation, f32 output) ------------------
    mod2_bf16 = ExamplePluginModulePallas(w2, b2, compute_dtype=jnp.bfloat16)
    y2b = jax.block_until_ready(mod2_bf16(x2))
    rel_err = jnp.max(jnp.abs(y2b - y2_ref)) / (jnp.max(jnp.abs(y2_ref)) + 1e-6)
    assert rel_err < 5e-2, f"bf16 path mismatch, rel err {rel_err}"

    print("KERNEL_OK")
</pallas_src>

<mosaic_0001>
module attributes {stable_mosaic.version = 11 : i64} {
  func.func @_linear_kernel_f32_out(%arg0: i32, %arg1: i32, %arg2: i32, %arg3: memref<8x128xf32, #tpu.memory_space<vmem>>, %arg4: memref<128x128xf32, #tpu.memory_space<vmem>>, %arg5: memref<1x128xf32, #tpu.memory_space<vmem>>, %arg6: memref<8x128xf32, #tpu.memory_space<vmem>>) attributes {dimension_semantics = [#tpu.dimension_semantics<parallel>, #tpu.dimension_semantics<parallel>, #tpu.dimension_semantics<arbitrary>], iteration_bounds = array<i64: 1, 1, 1>, scalar_prefetch = 0 : i64, scratch_operands = 0 : i64, tpu.core_type = #tpu.core_type<tc>, window_params = [{transform_indices = @transform_0, window_bounds = array<i64: 8, 128>}, {transform_indices = @transform_1, window_bounds = array<i64: 128, 128>}, {transform_indices = @transform_2, window_bounds = array<i64: 1, 128>}, {transform_indices = @transform_3, window_bounds = array<i64: 8, 128>}]} {
    %c0 = arith.constant 0 : index
    %c0_0 = arith.constant 0 : index
    %0 = vector.load %arg3[%c0, %c0_0] : memref<8x128xf32, #tpu.memory_space<vmem>>, vector<8x128xf32>
    %c0_1 = arith.constant 0 : index
    %c0_2 = arith.constant 0 : index
    %1 = vector.load %arg4[%c0_1, %c0_2] : memref<128x128xf32, #tpu.memory_space<vmem>>, vector<128x128xf32>
    %cst = arith.constant dense<0.000000e+00> : vector<8x128xf32>
    %2 = tpu.matmul %0, %1, %cst {dimension_numbers = #tpu.dot_dimension_numbers<[1], [0], [0], [1], [0, 0, 1, 1], [], []>} : vector<8x128xf32>, vector<128x128xf32>, vector<8x128xf32> -> vector<8x128xf32>
    %c0_i32 = arith.constant 0 : i32
    %3 = arith.cmpi eq, %arg2, %c0_i32 : i32
    %4 = arith.extui %3 : i1 to i32
    %c0_i32_3 = arith.constant 0 : i32
    %5 = arith.cmpi ne, %4, %c0_i32_3 : i32
    scf.if %5 {
      %c0_6 = arith.constant 0 : index
      %c0_7 = arith.constant 0 : index
      %9 = vector.load %arg5[%c0_6, %c0_7] : memref<1x128xf32, #tpu.memory_space<vmem>>, vector<1x128xf32>
      %10 = vector.broadcast %9 : vector<1x128xf32> to vector<8x128xf32>
      %11 = arith.addf %2, %10 : vector<8x128xf32>
      %c0_8 = arith.constant 0 : index
      %c0_9 = arith.constant 0 : index
      %12 = vector.load %arg6[%c0_8, %c0_9] : memref<8x128xf32, #tpu.memory_space<vmem>>, vector<8x128xf32>
      tpu.vector_store %arg6[%c0_8, %c0_9], %11 {strides = array<i32>} : memref<8x128xf32, #tpu.memory_space<vmem>>, vector<8x128xf32>,
    } else {
    }
    %c0_i32_4 = arith.constant 0 : i32
    %6 = arith.cmpi ne, %arg2, %c0_i32_4 : i32
    %7 = arith.extui %6 : i1 to i32
    %c0_i32_5 = arith.constant 0 : i32
    %8 = arith.cmpi ne, %7, %c0_i32_5 : i32
    scf.if %8 {
      %c0_6 = arith.constant 0 : index
      %c0_7 = arith.constant 0 : index
      %9 = vector.load %arg6[%c0_6, %c0_7] : memref<8x128xf32, #tpu.memory_space<vmem>>, vector<8x128xf32>
      %10 = arith.addf %9, %2 : vector<8x128xf32>
      %c0_8 = arith.constant 0 : index
      %c0_9 = arith.constant 0 : index
      %11 = vector.load %arg6[%c0_8, %c0_9] : memref<8x128xf32, #tpu.memory_space<vmem>>, vector<8x128xf32>
      tpu.vector_store %arg6[%c0_8, %c0_9], %10 {strides = array<i32>} : memref<8x128xf32, #tpu.memory_space<vmem>>, vector<8x128xf32>,
    } else {
    }
    return
  }
  func.func @transform_0(%arg0: i32, %arg1: i32, %arg2: i32) -> (i32, i32) {
    %c0_i32 = arith.constant 0 : i32
    return %arg0, %arg2 : i32, i32
  }
  func.func @transform_1(%arg0: i32, %arg1: i32, %arg2: i32) -> (i32, i32) {
    %c0_i32 = arith.constant 0 : i32
    return %arg2, %arg1 : i32, i32
  }
  func.func @transform_2(%arg0: i32, %arg1: i32, %arg2: i32) -> (i32, i32) {
    %c0_i32 = arith.constant 0 : i32
    %c0_i32_0 = arith.constant 0 : i32
    return %c0_i32, %arg1 : i32, i32
  }
  func.func @transform_3(%arg0: i32, %arg1: i32, %arg2: i32) -> (i32, i32) {
    %c0_i32 = arith.constant 0 : i32
    return %arg0, %arg1 : i32, i32
  }
}

</mosaic_0001>

<llo_original>
// kernel: tpu_custom_call.1
$region0: #{tpu_custom_call.1}
  #allocation0 [shape = 'u32[]', space=smem, size = 0x4, offset = 0x4, fixed_abs, tag = 'smem constant byte address 0x4 - core index']
  #allocation1 [shape = 'u32[144,128]{1,0:T(1,128)}', space=vmem, size = 0x12000, scoped, tag = 'internal scratch']
  %s0 = inlined_call_operand.hbm [shape: f32[8,128], index: 0, kind: input, shape index: {}]
  %s1 = inlined_call_operand.hbm [shape: f32[128,128], index: 1, kind: input, shape index: {}]
  %s2 = inlined_call_operand.vmem [shape: f32[1,128], index: 2, kind: input, shape index: {}]
  %s3 = inlined_call_operand.hbm [shape: f32[8,128], index: 3, kind: output, shape index: {}]
  %s4 = sld [smem:[#allocation0]]
  $region38: #{tpu_custom_call.1} parent=0
    _
  %s6 = ssub.s32 1, %s4
  %s7 = scalar_select 0, %s6, %s4
  $region1: #{tpu_custom_call.1} parent=0
    #allocation2 [shape = 'u8[4096]{0}', space=vmem, size = 0x1000, scoped, tag = 'input window, operand 0, single buffered']
    #allocation3 [shape = 's32[1]{0}', space=sflag, size = 0x4, scoped, tag = 'scoped memory for tpu_custom_call.1']
    #allocation4 [shape = 's32[1]{0}', space=sflag, size = 0x4, scoped, tag = 'scoped memory for tpu_custom_call.1']
    #allocation5 [shape = 'u8[65536]{0}', space=vmem, size = 0x10000, scoped, tag = 'input window, operand 1, single buffered']
    #allocation6 [shape = 's32[1]{0}', space=sflag, size = 0x4, scoped, tag = 'scoped memory for tpu_custom_call.1']
    #allocation7 [shape = 'u8[4096]{0}', space=vmem, size = 0x1000, scoped, tag = 'output window, operand 0, single buffered']
    %8 = vsyncpa [#allocation3], 0
    %9 = vsyncpa [#allocation6], 0
    %10 = vsyncpa [#allocation4], 0
    // Predicated region
    $region2: #{tpu_custom_call.1} parent=1 // pred_check
      _
    $region3: #{tpu_custom_call.1} parent=1 // pred_check_branch
      %12 = sbr.rel (0) target = $region5
    $region4: #{tpu_custom_call.1} parent=1 // pred_region
      %s14 = ssub.s32 128, 128
      %15 = vsyncadd [#allocation3], %s14
      %s17 = sshll.u32 [#allocation2], 4
      %s18 = int_to_ptr.vmem [resolvable:$true] %s17
      %20 = dma.hbm_to_vmem [thread:$0]  %s0, 128, %s18, [#allocation3]
    $region5: #{tpu_custom_call.1} parent=1 // pred_fallthru
      _
    // Predicated region
    $region6: #{tpu_custom_call.1} parent=1 // pred_check
      _
    $region7: #{tpu_custom_call.1} parent=1 // pred_check_branch
      %22 = sbr.rel (0) target = $region9
    $region8: #{tpu_custom_call.1} parent=1 // pred_region
      %s24 = ssub.s32 2048, 2048
      %25 = vsyncadd [#allocation6], %s24
      %s26 = sshll.u32 [#allocation5], 4
      %s27 = int_to_ptr.vmem [resolvable:$true] %s26
      %32 = dma.hbm_to_vmem [thread:$0]  %s1, 2048, %s27, [#allocation6], 128, 128, 8
    $region9: #{tpu_custom_call.1} parent=1 // pred_fallthru
      _
    // Predicated region
    $region10: #{tpu_custom_call.1} parent=1 // pred_check
      _
    $region11: #{tpu_custom_call.1} parent=1 // pred_check_branch
      %34 = sbr.rel (0) target = $region13
    $region12: #{tpu_custom_call.1} parent=1 // pred_region
      _
    $region13: #{tpu_custom_call.1} parent=1 // pred_fallthru
      _
    // Predicated region
    $region14: #{tpu_custom_call.1} parent=1 // pred_check
      _
    $region15: #{tpu_custom_call.1} parent=1 // pred_check_branch
      %36 = sbr.rel (0) target = $region17
    $region16: #{tpu_custom_call.1} parent=1 // pred_region
      %37 = dma.done [#allocation3], 128
    $region17: #{tpu_custom_call.1} parent=1 // pred_fallthru
      _
    // Predicated region
    $region18: #{tpu_custom_call.1} parent=1 // pred_check
      _
    $region19: #{tpu_custom_call.1} parent=1 // pred_check_branch
      %39 = sbr.rel (0) target = $region21
    $region20: #{tpu_custom_call.1} parent=1 // pred_region
      %40 = dma.done [#allocation6], 2048
    $region21: #{tpu_custom_call.1} parent=1 // pred_fallthru
      _
    %v41 = vld [vmem:[#allocation2] sm:$0xff]
    %v42 = vld [vmem:[#allocation5] sm:$0xff]
    %v43 = vld [vmem:[#allocation5 + $0x8] sm:$0xff]
    %v44 = vld [vmem:[#allocation5 + $0x10] sm:$0xff]
    %v45 = vld [vmem:[#allocation5 + $0x18] sm:$0xff]
    %v46 = vld [vmem:[#allocation5 + $0x20] sm:$0xff]
    %v47 = vld [vmem:[#allocation5 + $0x28] sm:$0xff]
    %v48 = vld [vmem:[#allocation5 + $0x30] sm:$0xff]
    %v49 = vld [vmem:[#allocation5 + $0x38] sm:$0xff]
    %v50 = vld [vmem:[#allocation5 + $0x40] sm:$0xff]
    %v51 = vld [vmem:[#allocation5 + $0x48] sm:$0xff]
    %v52 = vld [vmem:[#allocation5 + $0x50] sm:$0xff]
    %v53 = vld [vmem:[#allocation5 + $0x58] sm:$0xff]
    %v54 = vld [vmem:[#allocation5 + $0x60] sm:$0xff]
    %v55 = vld [vmem:[#allocation5 + $0x68] sm:$0xff]
    %v56 = vld [vmem:[#allocation5 + $0x70] sm:$0xff]
    %v57 = vld [vmem:[#allocation5 + $0x78] sm:$0xff]
    %58 = vmatprep.subr.mxu0 0.0
    %59 = vmatpush1.msra.mxu0 %v42
    %60 = vmatprep.subr.mxu0 0.0
    %61 = vmatpush1.msra.mxu0 %v43
    %62 = vmatprep.subr.mxu0 0.0
    %63 = vmatpush1.msra.mxu0 %v44
    %64 = vmatprep.subr.mxu0 0.0
    %65 = vmatpush1.msra.mxu0 %v45
    %66 = vmatprep.subr.mxu0 0.0
    %67 = vmatpush1.msra.mxu0 %v46
    %68 = vmatprep.subr.mxu0 0.0
    %69 = vmatpush1.msra.mxu0 %v47
    %70 = vmatprep.subr.mxu0 0.0
    %71 = vmatpush1.msra.mxu0 %v48
    %72 = vmatprep.subr.mxu0 0.0
    %73 = vmatpush1.msra.mxu0 %v49
    %74 = vmatprep.subr.mxu0 0.0
    %75 = vmatpush1.msra.mxu0 %v50
    %76 = vmatprep.subr.mxu0 0.0
    %77 = vmatpush1.msra.mxu0 %v51
    %78 = vmatprep.subr.mxu0 0.0
    %79 = vmatpush1.msra.mxu0 %v52
    %80 = vmatprep.subr.mxu0 0.0
    %81 = vmatpush1.msra.mxu0 %v53
    %82 = vmatprep.subr.mxu0 0.0
    %83 = vmatpush1.msra.mxu0 %v54
    %84 = vmatprep.subr.mxu0 0.0
    %85 = vmatpush1.msra.mxu0 %v55
    %86 = vmatprep.subr.mxu0 0.0
    %87 = vmatpush1.msra.mxu0 %v56
    %88 = vmatprep.subr.mxu0 0.0
    %89 = vmatpush1.msra.mxu0 %v57
    %90 = vmatprep.subr.mxu0 0.0
    %91 = vmatpush1.msra.mxu0 0.0
    %92 = vmatprep.subr.mxu0 0.0
    %93 = vmatpush1.msra.mxu0 0.0
    %94 = vmatprep.subr.mxu0 0.0
    %95 = vmatpush1.msra.mxu0 0.0
    %96 = vmatprep.subr.mxu0 0.0
    %97 = vmatpush1.msra.mxu0 0.0
    %98 = vmatprep.subr.mxu0 0.0
    %99 = vmatpush1.msra.mxu0 0.0
    %100 = vmatprep.subr.mxu0 0.0
    %101 = vmatpush1.msra.mxu0 0.0
    %102 = vmatprep.subr.mxu0 0.0
    %103 = vmatpush1.msra.mxu0 0.0
    %104 = vmatprep.subr.mxu0 0.0
    %105 = vmatpush1.msra.mxu0 0.0
    %106 = vmatprep.subr.mxu0 0.0
    %107 = vmatpush1.msra.mxu0 0.0
    %108 = vmatprep.subr.mxu0 0.0
    %109 = vmatpush1.msra.mxu0 0.0
    %110 = vmatprep.subr.mxu0 0.0
    %111 = vmatpush1.msra.mxu0 0.0
    %112 = vmatprep.subr.mxu0 0.0
    %113 = vmatpush1.msra.mxu0 0.0
    %114 = vmatprep.subr.mxu0 0.0
    %115 = vmatpush1.msra.mxu0 0.0
    %116 = vmatprep.subr.mxu0 0.0
    %117 = vmatpush1.msra.mxu0 0.0
    %118 = vmatprep.subr.mxu0 0.0
    %119 = vmatpush1.msra.mxu0 0.0
    %120 = vmatprep.subr.mxu0 0.0
    %121 = vmatpush1.msra.mxu0 0.0
    %122 = vmatprep.mubr.f32.mxu0 0.0
    %123 = vmatmul.mubr.f32.gmra.mrb[0].mxu0 %v41
    %v124 = vpop.f32.mrb[0].mxu0
    %v125 = vadd.f32 0.0, %v124
    %v126 = vpop.f32.mrb[0].mxu0
    %127 = vdwg.mxu0
    %p128 = scmp.eq.s32.totalorder 0, 0
    // Predicated region
    $region22: #{tpu_custom_call.1} parent=1 // pred_check
      %p129 = pneg %p128
    $region23: #{tpu_custom_call.1} parent=1 // pred_check_branch
      %131 = sbr.rel (%p129) target = $region25
    $region24: #{tpu_custom_call.1} parent=1 // pred_region
      %v132 = vld [vmem:[%s2] sm:$0x1]
      %v134 = vlaneseq
      %v135 = vshrl.u32 %v134, 7
      %v136 = vsub.s32 0, %v135
      %v137 = vrot.slane %v132, %v136
      %v139 = vadd.f32 %v125, %v137
      %140 = vst [vmem:[#allocation7] sm:$0xff] %v139
    $region25: #{tpu_custom_call.1} parent=1 // pred_fallthru
      _
    %p141 = scmp.ne.s32.totalorder 0, 0
    // Predicated region
    $region26: #{tpu_custom_call.1} parent=1 // pred_check
      %p142 = pneg %p141
    $region27: #{tpu_custom_call.1} parent=1 // pred_check_branch
      %144 = sbr.rel (%p142) target = $region29
    $region28: #{tpu_custom_call.1} parent=1 // pred_region
      %v145 = vld [vmem:[#allocation7] sm:$0xff]
      %v146 = vadd.f32 %v145, %v125
      %147 = vst [vmem:[#allocation7] sm:$0xff] %v146
    $region29: #{tpu_custom_call.1} parent=1 // pred_fallthru
      _
    // Predicated region
    $region30: #{tpu_custom_call.1} parent=1 // pred_check
      _
    $region31: #{tpu_custom_call.1} parent=1 // pred_check_branch
      %149 = sbr.rel (0) target = $region33
    $region32: #{tpu_custom_call.1} parent=1 // pred_region
      %s151 = ssub.s32 128, 128
      %152 = vsyncadd [#allocation4], %s151
      %s154 = sshll.u32 [#allocation7], 4
      %s155 = int_to_ptr.vmem [resolvable:$true] %s154
      %157 = dma.vmem_to_hbm [thread:$0]  %s155, 128, %s3, [#allocation4]
    $region33: #{tpu_custom_call.1} parent=1 // pred_fallthru
      _
    // Predicated region
    $region34: #{tpu_custom_call.1} parent=1 // pred_check
      _
    $region35: #{tpu_custom_call.1} parent=1 // pred_check_branch
      %159 = sbr.rel (0) target = $region37
    $region36: #{tpu_custom_call.1} parent=1 // pred_region
      %160 = dma.done [#allocation4], 128
    $region37: #{tpu_custom_call.1} parent=1 // pred_fallthru
      _
    %161 = vsyncpa [#allocation3], 1
    %162 = vsyncpa [#allocation6], 1
    %163 = vsyncpa [#allocation4], 1

</llo_original>
